<compile_context>
chip_gen: v5e
topology: v5e:2x2
jax: 0.10.0
libtpu: 0.0.40
codegen_flags: <defaults>
</compile_context>

<pallas_src>
import numpy as np
import jax
import jax.numpy as jnp
from jax import lax
from jax.experimental import pallas as pl
from jax.experimental.pallas import tpu as pltpu


# ----------------------------------------------------------------------------
# DFT codebook (same as the PyTorch helper, vectorized)
# ----------------------------------------------------------------------------
def dft_codebook(num_beams, num_antennas):
    n = np.arange(num_antennas)[:, None]
    i = np.arange(num_beams)[None, :]
    return np.exp(-1j * 2.0 * np.pi * n * i / num_beams) / np.sqrt(num_antennas)


# ----------------------------------------------------------------------------
# Pallas kernel: per-batch SE terms, accumulated across the grid
# ----------------------------------------------------------------------------
def _make_se_kernel(Nt, K, B, noise_scale):
    noise_scale = np.float32(noise_scale)
    inv_total = np.float32(1.0 / (B * K))

    def kernel(beam_ids_ref, h_ref, w_ref, out_ref):
        del beam_ids_ref  # only consumed by the index_maps
        b = pl.program_id(0)

        x = h_ref[0]          # (K, 2*Nt) packed [hr | hi]
        w = w_ref[0]          # (1, 2*Nt) packed [br | bi] — selected codeword

        hr, hi = x[:, :Nt], x[:, Nt:]
        br, bi = w[:, :Nt], w[:, Nt:]

        # ||h_{bk}||^2 per subcarrier row
        power = jnp.sum(hr * hr + hi * hi, axis=1, keepdims=True)      # (K, 1)
        # ||w_b||^2 (DFT codewords are unit norm; reduced once per b, not per row)
        bnorm2 = jnp.sum(br * br + bi * bi)                            # scalar

        # complex dot product  w^T h  (no conjugation, matching torch.matmul(D, H))
        dot_r = jnp.sum(br * hr - bi * hi, axis=1, keepdims=True)      # (K, 1)
        dot_i = jnp.sum(br * hi + bi * hr, axis=1, keepdims=True)      # (K, 1)

        # |D @ H|^2 with D normalized by its 2-norm
        sig1 = (dot_r * dot_r + dot_i * dot_i) / bnorm2                # (K, 1)

        # noise_var = ||h||^2 / Nt * 10^(-SNR/10); use EUP approx reciprocal
        inv_noise = pl.reciprocal(power * noise_scale, approx=True)    # (K, 1)

        se_rows = -jnp.log2(1.0 + sig1 * inv_noise)                    # (K, 1)
        se0_rows = -jnp.log2(1.0 + power * inv_noise)                  # (K, 1)

        se_sum = jnp.sum(se_rows)
        se0_sum = jnp.sum(se0_rows)

        # lane-dense (1, 128) contribution: lane 0 = SE sum, lane 1 = SE0 sum
        lane = lax.broadcasted_iota(jnp.int32, out_ref.shape, 1)
        contrib = (jnp.where(lane == 0, se_sum, 0.0)
                   + jnp.where(lane == 1, se0_sum, 0.0))

        @pl.when(b == 0)
        def _():
            out_ref[...] = jnp.zeros_like(out_ref)

        out_ref[...] += contrib

        @pl.when(b == pl.num_programs(0) - 1)
        def _():
            out_ref[...] = out_ref[...] * inv_total   # mean over B*K rows

    return kernel


# ----------------------------------------------------------------------------
# Wrapper (packs real/imag on the lane axis; beam gather folded into index_map)
# ----------------------------------------------------------------------------
def se_loss_mmwave(h, beam_id, snr=10, num_codebook=256):
    """h: complex (B, Nt, K); beam_id: int (B,). Returns (SE, SE0) scalars."""
    B, Nt, K = h.shape
    lanes = 2 * Nt                                   # 128 for Nt = 64

    # Packed codebook, row i = codeword i, [real | imag] along the lane axis.
    cb = dft_codebook(num_codebook, Nt).T            # (num_codebook, Nt) complex
    cb_packed = np.concatenate([cb.real, cb.imag], axis=-1).astype(np.float32)
    cb_packed = jnp.asarray(cb_packed.reshape(num_codebook, 1, lanes))

    # h.permute(0,2,1) -> (B, K, Nt); pack [real | imag] -> (B, K, 2*Nt)
    h_bk = jnp.transpose(h, (0, 2, 1))
    h_packed = jnp.concatenate(
        [jnp.real(h_bk), jnp.imag(h_bk)], axis=-1).astype(jnp.float32)

    beam_id = beam_id.astype(jnp.int32)
    noise_scale = (10.0 ** (-snr / 10.0)) / Nt
    kernel = _make_se_kernel(Nt, K, B, noise_scale)

    grid_spec = pltpu.PrefetchScalarGridSpec(
        num_scalar_prefetch=1,
        grid=(B,),
        in_specs=[
            pl.BlockSpec((1, K, lanes), lambda b, beam_ids: (b, 0, 0)),
            pl.BlockSpec((1, 1, lanes), lambda b, beam_ids: (beam_ids[b], 0, 0)),
        ],
        out_specs=pl.BlockSpec((1, lanes), lambda b, beam_ids: (0, 0)),
    )

    out = pl.pallas_call(
        kernel,
        grid_spec=grid_spec,
        out_shape=jax.ShapeDtypeStruct((1, lanes), jnp.float32),
        compiler_params=pltpu.CompilerParams(
            dimension_semantics=("arbitrary",)),
    )(beam_id, h_packed, cb_packed)

    return out[0, 0], out[0, 1]


# ----------------------------------------------------------------------------
# Pure-JAX reference (same math, float32) for a sanity check
# ----------------------------------------------------------------------------
def se_loss_mmwave_ref(h, beam_id, snr=10, num_codebook=256):
    B, Nt, K = h.shape
    codebook = jnp.asarray(dft_codebook(num_codebook, Nt), dtype=jnp.complex64)
    beam = jnp.transpose(codebook[:, beam_id])
    h_bk = jnp.transpose(h, (0, 2, 1)).reshape(B * K, Nt)
    beam_bk = jnp.repeat(beam, K, axis=0)
    power = jnp.sum(jnp.abs(h_bk) ** 2, axis=1)
    bnorm2 = jnp.sum(jnp.abs(beam_bk) ** 2, axis=1)
    dot = jnp.sum(beam_bk * h_bk, axis=1)
    sig1 = jnp.abs(dot) ** 2 / bnorm2
    noise_var = power / Nt * (10.0 ** (-snr / 10.0))
    se = -jnp.mean(jnp.log2(1.0 + sig1 / noise_var))
    se0 = -jnp.mean(jnp.log2(1.0 + power / noise_var))
    return se, se0


if __name__ == "__main__":
    B, Nt, K = 2, 64, 8           # Nt = 64 antennas (codebook is 64 x 256)
    SNR, NUM_CB = 10, 256

    key = jax.random.PRNGKey(0)
    k1, k2, k3 = jax.random.split(key, 3)
    h_real = jax.random.normal(k1, (B, Nt, K), dtype=jnp.float32)
    h_imag = jax.random.normal(k2, (B, Nt, K), dtype=jnp.float32)
    h = (h_real + 1j * h_imag).astype(jnp.complex64)
    beam_id = jax.random.randint(k3, (B,), 0, NUM_CB, dtype=jnp.int32)

    se, se0 = jax.jit(lambda a, b: se_loss_mmwave(a, b, snr=SNR, num_codebook=NUM_CB))(
        h, beam_id
    )
    jax.block_until_ready((se, se0))

    se_ref, se0_ref = se_loss_mmwave_ref(h, beam_id, snr=SNR, num_codebook=NUM_CB)
    np.testing.assert_allclose(np.array(se), np.array(se_ref), rtol=1e-3, atol=1e-3)
    np.testing.assert_allclose(np.array(se0), np.array(se0_ref), rtol=1e-3, atol=1e-3)

    print("KERNEL_OK")
</pallas_src>

<mosaic_0001>
module attributes {stable_mosaic.version = 11 : i64} {
  func.func @kernel(%arg0: i32, %arg1: memref<2xi32, #tpu.memory_space<smem>>, %arg2: memref<1x8x128xf32, #tpu.memory_space<vmem>>, %arg3: memref<1x1x128xf32, #tpu.memory_space<vmem>>, %arg4: memref<1x128xf32, #tpu.memory_space<vmem>>) attributes {dimension_semantics = [#tpu.dimension_semantics<arbitrary>], iteration_bounds = array<i64: 2>, scalar_prefetch = 1 : i64, scratch_operands = 0 : i64, tpu.core_type = #tpu.core_type<tc>, window_params = [{transform_indices = @transform_0, window_bounds = array<i64: 1, 8, 128>}, {transform_indices = @transform_1, window_bounds = array<i64: 1, 1, 128>}, {pipeline_mode = #tpu.pipeline_mode<synchronous>, transform_indices = @transform_2, window_bounds = array<i64: 1, 128>}]} {
    %c0 = arith.constant 0 : index
    %c0_0 = arith.constant 0 : index
    %c0_1 = arith.constant 0 : index
    %0 = vector.load %arg2[%c0, %c0_0, %c0_1] : memref<1x8x128xf32, #tpu.memory_space<vmem>>, vector<1x8x128xf32>
    %1 = vector.shape_cast %0 : vector<1x8x128xf32> to vector<8x128xf32>
    %c0_2 = arith.constant 0 : index
    %c0_3 = arith.constant 0 : index
    %c0_4 = arith.constant 0 : index
    %2 = vector.load %arg3[%c0_2, %c0_3, %c0_4] : memref<1x1x128xf32, #tpu.memory_space<vmem>>, vector<1x1x128xf32>
    %3 = vector.shape_cast %2 : vector<1x1x128xf32> to vector<1x128xf32>
    %4 = vector.extract_strided_slice %1 {offsets = [0, 0], sizes = [8, 64], strides = [1, 1]} : vector<8x128xf32> to vector<8x64xf32>
    %5 = vector.extract_strided_slice %1 {offsets = [0, 64], sizes = [8, 64], strides = [1, 1]} : vector<8x128xf32> to vector<8x64xf32>
    %6 = vector.extract_strided_slice %3 {offsets = [0, 0], sizes = [1, 64], strides = [1, 1]} : vector<1x128xf32> to vector<1x64xf32>
    %7 = vector.extract_strided_slice %3 {offsets = [0, 64], sizes = [1, 64], strides = [1, 1]} : vector<1x128xf32> to vector<1x64xf32>
    %8 = arith.mulf %4, %4 : vector<8x64xf32>
    %9 = arith.mulf %5, %5 : vector<8x64xf32>
    %10 = arith.addf %8, %9 : vector<8x64xf32>
    %cst = arith.constant dense<0.000000e+00> : vector<8xf32>
    %11 = vector.multi_reduction <add>, %10, %cst [1] : vector<8x64xf32> to vector<8xf32>
    %12 = vector.shape_cast %11 : vector<8xf32> to vector<8x1xf32>
    %13 = arith.mulf %6, %6 : vector<1x64xf32>
    %14 = arith.mulf %7, %7 : vector<1x64xf32>
    %15 = arith.addf %13, %14 : vector<1x64xf32>
    %16 = vector.shape_cast %15 : vector<1x64xf32> to vector<1x1x64xf32>
    %cst_5 = arith.constant dense<0.000000e+00> : vector<1xf32>
    %17 = vector.multi_reduction <add>, %16, %cst_5 [1, 2] : vector<1x1x64xf32> to vector<1xf32>
    %18 = vector.shape_cast %17 : vector<1xf32> to vector<1x1x1xf32>
    %19 = vector.extract %18[0, 0, 0] : f32 from vector<1x1x1xf32>
    %20 = vector.broadcast %6 : vector<1x64xf32> to vector<8x64xf32>
    %21 = arith.mulf %20, %4 : vector<8x64xf32>
    %22 = vector.broadcast %7 : vector<1x64xf32> to vector<8x64xf32>
    %23 = arith.mulf %22, %5 : vector<8x64xf32>
    %24 = arith.subf %21, %23 : vector<8x64xf32>
    %cst_6 = arith.constant dense<0.000000e+00> : vector<8xf32>
    %25 = vector.multi_reduction <add>, %24, %cst_6 [1] : vector<8x64xf32> to vector<8xf32>
    %26 = vector.shape_cast %25 : vector<8xf32> to vector<8x1xf32>
    %27 = vector.broadcast %6 : vector<1x64xf32> to vector<8x64xf32>
    %28 = arith.mulf %27, %5 : vector<8x64xf32>
    %29 = vector.broadcast %7 : vector<1x64xf32> to vector<8x64xf32>
    %30 = arith.mulf %29, %4 : vector<8x64xf32>
    %31 = arith.addf %28, %30 : vector<8x64xf32>
    %cst_7 = arith.constant dense<0.000000e+00> : vector<8xf32>
    %32 = vector.multi_reduction <add>, %31, %cst_7 [1] : vector<8x64xf32> to vector<8xf32>
    %33 = vector.shape_cast %32 : vector<8xf32> to vector<8x1xf32>
    %34 = arith.mulf %26, %26 : vector<8x1xf32>
    %35 = arith.mulf %33, %33 : vector<8x1xf32>
    %36 = arith.addf %34, %35 : vector<8x1xf32>
    %37 = vector.broadcast %19 : f32 to vector<8x1xf32>
    %38 = arith.divf %36, %37 : vector<8x1xf32>
    %cst_8 = arith.constant 1.562500e-03 : f32
    %39 = vector.broadcast %cst_8 : f32 to vector<8x1xf32>
    %40 = arith.mulf %12, %39 : vector<8x1xf32>
    %41 = tpu.reciprocal %40 {approx = true} : vector<8x1xf32> -> vector<8x1xf32>
    %42 = arith.mulf %38, %41 : vector<8x1xf32>
    %cst_9 = arith.constant 1.000000e+00 : f32
    %43 = vector.broadcast %cst_9 : f32 to vector<8x1xf32>
    %44 = arith.addf %43, %42 : vector<8x1xf32>
    %45 = math.log %44 : vector<8x1xf32>
    %cst_10 = arith.constant 2.000000e+00 : f32
    %46 = math.log %cst_10 : f32
    %47 = vector.broadcast %46 : f32 to vector<8x1xf32>
    %48 = arith.divf %45, %47 : vector<8x1xf32>
    %cst_11 = arith.constant 0.000000e+00 : f32
    %49 = vector.broadcast %cst_11 : f32 to vector<8x1xf32>
    %50 = arith.subf %49, %48 : vector<8x1xf32>
    %51 = arith.mulf %12, %41 : vector<8x1xf32>
    %cst_12 = arith.constant 1.000000e+00 : f32
    %52 = vector.broadcast %cst_12 : f32 to vector<8x1xf32>
    %53 = arith.addf %52, %51 : vector<8x1xf32>
    %54 = math.log %53 : vector<8x1xf32>
    %cst_13 = arith.constant 2.000000e+00 : f32
    %55 = math.log %cst_13 : f32
    %56 = vector.broadcast %55 : f32 to vector<8x1xf32>
    %57 = arith.divf %54, %56 : vector<8x1xf32>
    %cst_14 = arith.constant 0.000000e+00 : f32
    %58 = vector.broadcast %cst_14 : f32 to vector<8x1xf32>
    %59 = arith.subf %58, %57 : vector<8x1xf32>
    %60 = vector.shape_cast %50 : vector<8x1xf32> to vector<1x8x1xf32>
    %cst_15 = arith.constant dense<0.000000e+00> : vector<1xf32>
    %61 = vector.multi_reduction <add>, %60, %cst_15 [1, 2] : vector<1x8x1xf32> to vector<1xf32>
    %62 = vector.shape_cast %61 : vector<1xf32> to vector<1x1x1xf32>
    %63 = vector.extract %62[0, 0, 0] : f32 from vector<1x1x1xf32>
    %64 = vector.shape_cast %59 : vector<8x1xf32> to vector<1x8x1xf32>
    %cst_16 = arith.constant dense<0.000000e+00> : vector<1xf32>
    %65 = vector.multi_reduction <add>, %64, %cst_16 [1, 2] : vector<1x8x1xf32> to vector<1xf32>
    %66 = vector.shape_cast %65 : vector<1xf32> to vector<1x1x1xf32>
    %67 = vector.extract %66[0, 0, 0] : f32 from vector<1x1x1xf32>
    %68 = tpu.iota {dimensions = array<i32: 1>} : vector<1x128xi32>
    %c0_i32 = arith.constant 0 : i32
    %69 = vector.broadcast %c0_i32 : i32 to vector<1x128xi32>
    %70 = arith.cmpi eq, %68, %69 : vector<1x128xi32>
    %cst_17 = arith.constant 0.000000e+00 : f32
    %71 = vector.broadcast %63 : f32 to vector<1x128xf32>
    %72 = vector.broadcast %cst_17 : f32 to vector<1x128xf32>
    %73 = arith.select %70, %71, %72 : vector<1x128xi1>, vector<1x128xf32>
    %c1_i32 = arith.constant 1 : i32
    %74 = vector.broadcast %c1_i32 : i32 to vector<1x128xi32>
    %75 = arith.cmpi eq, %68, %74 : vector<1x128xi32>
    %cst_18 = arith.constant 0.000000e+00 : f32
    %76 = vector.broadcast %67 : f32 to vector<1x128xf32>
    %77 = vector.broadcast %cst_18 : f32 to vector<1x128xf32>
    %78 = arith.select %75, %76, %77 : vector<1x128xi1>, vector<1x128xf32>
    %79 = arith.addf %73, %78 : vector<1x128xf32>
    %c0_i32_19 = arith.constant 0 : i32
    %80 = arith.cmpi eq, %arg0, %c0_i32_19 : i32
    %81 = arith.extui %80 : i1 to i32
    %c0_i32_20 = arith.constant 0 : i32
    %82 = arith.cmpi ne, %81, %c0_i32_20 : i32
    scf.if %82 {
      %cst_27 = arith.constant 0.000000e+00 : f32
      %89 = vector.broadcast %cst_27 : f32 to vector<1x128xf32>
      %c0_28 = arith.constant 0 : index
      %c0_29 = arith.constant 0 : index
      %90 = vector.load %arg4[%c0_28, %c0_29] : memref<1x128xf32, #tpu.memory_space<vmem>>, vector<1x128xf32>
      tpu.vector_store %arg4[%c0_28, %c0_29], %89 {strides = array<i32>} : memref<1x128xf32, #tpu.memory_space<vmem>>, vector<1x128xf32>,
    } else {
    }
    %c0_21 = arith.constant 0 : index
    %c0_22 = arith.constant 0 : index
    %83 = vector.load %arg4[%c0_21, %c0_22] : memref<1x128xf32, #tpu.memory_space<vmem>>, vector<1x128xf32>
    %84 = arith.addf %83, %79 : vector<1x128xf32>
    %c0_23 = arith.constant 0 : index
    %c0_24 = arith.constant 0 : index
    %85 = vector.load %arg4[%c0_23, %c0_24] : memref<1x128xf32, #tpu.memory_space<vmem>>, vector<1x128xf32>
    tpu.vector_store %arg4[%c0_23, %c0_24], %84 {strides = array<i32>} : memref<1x128xf32, #tpu.memory_space<vmem>>, vector<1x128xf32>,
    %c1_i32_25 = arith.constant 1 : i32
    %86 = arith.cmpi eq, %arg0, %c1_i32_25 : i32
    %87 = arith.extui %86 : i1 to i32
    %c0_i32_26 = arith.constant 0 : i32
    %88 = arith.cmpi ne, %87, %c0_i32_26 : i32
    scf.if %88 {
      %c0_27 = arith.constant 0 : index
      %c0_28 = arith.constant 0 : index
      %89 = vector.load %arg4[%c0_27, %c0_28] : memref<1x128xf32, #tpu.memory_space<vmem>>, vector<1x128xf32>
      %cst_29 = arith.constant 6.250000e-02 : f32
      %90 = vector.broadcast %cst_29 : f32 to vector<1x128xf32>
      %91 = arith.mulf %89, %90 : vector<1x128xf32>
      %c0_30 = arith.constant 0 : index
      %c0_31 = arith.constant 0 : index
      %92 = vector.load %arg4[%c0_30, %c0_31] : memref<1x128xf32, #tpu.memory_space<vmem>>, vector<1x128xf32>
      tpu.vector_store %arg4[%c0_30, %c0_31], %91 {strides = array<i32>} : memref<1x128xf32, #tpu.memory_space<vmem>>, vector<1x128xf32>,
    } else {
    }
    return
  }
  func.func @transform_0(%arg0: i32, %arg1: memref<2xi32, #tpu.memory_space<smem>>) -> (i32, i32, i32) {
    %c0_i32 = arith.constant 0 : i32
    %c0_i32_0 = arith.constant 0 : i32
    %c0_i32_1 = arith.constant 0 : i32
    return %arg0, %c0_i32, %c0_i32_0 : i32, i32, i32
  }
  func.func @transform_1(%arg0: i32, %arg1: memref<2xi32, #tpu.memory_space<smem>>) -> (i32, i32, i32) {
    %0 = arith.index_cast %arg0 : i32 to index
    %1 = memref.load %arg1[%0] : memref<2xi32, #tpu.memory_space<smem>>
    %c0_i32 = arith.constant 0 : i32
    %c0_i32_0 = arith.constant 0 : i32
    %c0_i32_1 = arith.constant 0 : i32
    return %1, %c0_i32, %c0_i32_0 : i32, i32, i32
  }
  func.func @transform_2(%arg0: i32, %arg1: memref<2xi32, #tpu.memory_space<smem>>) -> (i32, i32) {
    %c0_i32 = arith.constant 0 : i32
    %c0_i32_0 = arith.constant 0 : i32
    %c0_i32_1 = arith.constant 0 : i32
    return %c0_i32, %c0_i32_0 : i32, i32
  }
}

</mosaic_0001>

<llo_original>
// kernel: custom-call.1
$region0: #{custom-call.1}
  %s0 = inlined_call_operand.hbm [shape: c64[2,64,8], index: 0, kind: input, shape index: {}]
  %s1 = inlined_call_operand.vmem [shape: f32[2,64,8], index: 1, kind: output, shape index: {}]
  %s2 = scalar_lea.hbm %s0, 16
  $region1: #{custom-call.1} parent=0
    #allocation0 [shape = 's32[1]{0}', space=sflag, size = 0x4, scoped, tag = 'scoped memory for custom-call.1']
    %3 = vsyncpa [#allocation0], 0
    %s5 = sshll.u32 %s2, 4
    %s6 = int_to_ptr.hbm [resolvable:$true] %s5
    %s7 = sshll.u32 %s1, 4
    %s8 = int_to_ptr.vmem [resolvable:$true] %s7
    %10 = dma.hbm_to_vmem [thread:$0]  %s6, 256, %s8, [#allocation0]
    %12 = dma.done [#allocation0], 256
    %13 = vsyncpa [#allocation0], 1

// kernel: custom-call
$region0: #{custom-call}
  %s0 = inlined_call_operand.hbm [shape: c64[2,64,8], index: 0, kind: input, shape index: {}]
  %s1 = inlined_call_operand.vmem [shape: f32[2,64,8], index: 1, kind: output, shape index: {}]
  $region1: #{custom-call} parent=0
    #allocation0 [shape = 's32[1]{0}', space=sflag, size = 0x4, scoped, tag = 'scoped memory for custom-call']
    %2 = vsyncpa [#allocation0], 0
    %s4 = sshll.u32 %s0, 4
    %s5 = int_to_ptr.hbm [resolvable:$true] %s4
    %s6 = sshll.u32 %s1, 4
    %s7 = int_to_ptr.vmem [resolvable:$true] %s6
    %9 = dma.hbm_to_vmem [thread:$0]  %s5, 256, %s7, [#allocation0]
    %11 = dma.done [#allocation0], 256
    %12 = vsyncpa [#allocation0], 1

// kernel: _lambda_.1
$region0: #{_lambda_.1}
  #allocation0 [shape = 'u32[]', space=smem, size = 0x4, offset = 0x4, fixed_abs, tag = 'smem constant byte address 0x4 - core index']
  #allocation1 [shape = 'u32[72,128]{1,0:T(1,128)}', space=vmem, size = 0x9000, scoped, tag = 'internal scratch']
  #allocation2 [shape = 's32[1]{0}', space=sflag, size = 0x4, scoped, tag = 'scoped memory for _lambda_.1']
  #allocation3 [shape = 'u8[512]{0}', space=smem, size = 0x200, scoped, tag = 'prefetched SMEM operand 0']
  %s0 = inlined_call_operand.vmem [shape: s32[2], index: 0, kind: input, shape index: {}]
  %s1 = inlined_call_operand.vmem [shape: f32[2,8,128], index: 1, kind: input, shape index: {}]
  %s2 = inlined_call_operand.hbm [shape: f32[256,1,128], index: 2, kind: input, shape index: {}]
  %s3 = inlined_call_operand.vmem [shape: f32[1,128], index: 3, kind: output, shape index: {}]
  %s4 = sld [smem:[#allocation0]]
  $region53: #{_lambda_.1} parent=0
    _
  %s6 = ssub.s32 1, %s4
  %s7 = scalar_select 0, %s6, %s4
  %s9 = sshll.u32 %s0, 4
  %s10 = int_to_ptr.vmem [resolvable:$true] %s9
  %12 = dma.vmem_to_smem %s10, 16, [#allocation3], [#allocation2]
  %14 = dma.done [#allocation2], 16
  %15 = sfence
  $region1: #{_lambda_.1} parent=0
    #allocation4 [shape = 'u8[1024]{0}', space=vmem, size = 0x400, scoped, tag = 'input window, operand 2']
    #allocation5 [shape = 's32[2]{0}', space=sflag, size = 0x8, scoped, tag = 'scoped memory for _lambda_.1']
    %16 = vsyncpa [#allocation5], 0
    %s17 = scalar_lea.sflag [#allocation5], 1
    %18 = vsyncpa %s17, 0
    loop: start=0, step=1, limit=4
    $region2: #{_lambda_.1} parent=1 // loop_pre_header
      _
    $region3: #{_lambda_.1} parent=1 // loop_header
      %s20 = sphi 0, %s24
      %p21 = scmp.ge.s32.totalorder %s20, 4
      %s30 = sphi 0, %s32
      %s33 = sphi 0, %s30
      %s34 = sphi 0, %s33
      %s50 = sphi 0, %s34
      %s58 = sphi 0, %s60
      %s61 = sphi 0, %s58
      %s62 = sphi 0, %s61
      %s78 = sphi 0, %s62
      %s82 = sphi 0, %s82
      %s84 = sphi 0, %s82
      %s85 = sphi 0, %s84
      %s99 = sphi 0, %s85
    $region4: #{_lambda_.1} parent=1 // loop_header_branch
      %23 = sbr.rel (%p21) target = $region8
    $region5: #{_lambda_.1} parent=1 // loop_body
      %s25 = ssub.s32 %s20, 1
      %s26 = ssub.s32 %s20, 2
      %s27 = sadd.s32 %s20, 1
      %s28 = ssub.s32 %s20, %s27
      %p29 = scmp.eq.s32.totalorder %s28, 0
      %s31 = sadd.s32 %s30, 1
      %s32 = scalar_select %p29, %s30, %s31
      %p35 = pneg %p29
      %p36 = scmp.eq.s32.totalorder %s20, 1
      %p37 = por %p35, %p36
      %p38 = scmp.ne.s32.totalorder %s30, %s33
      %p39 = scmp.eq.s32.totalorder %s20, 0
      %p40 = por %p38, %p39
      %p41 = scmp.ne.s32.totalorder %s30, %s33
      %p42 = scmp.eq.s32.totalorder %s25, 1
      %p43 = por %p41, %p42
      %p44 = scmp.ne.s32.totalorder %s33, %s34
      %p45 = scmp.eq.s32.totalorder %s25, 0
      %p46 = por %p44, %p45
      %p47 = scmp.ne.s32.totalorder %s33, %s34
      %p48 = scmp.eq.s32.totalorder %s26, 1
      %p49 = por %p47, %p48
      %p51 = scmp.ne.s32.totalorder %s34, %s50
      %p52 = scmp.eq.s32.totalorder %s26, 0
      %p53 = por %p51, %p52
      %s54 = sld [smem:[#allocation3 + %s20]]
      %s55 = sld [smem:[#allocation3 + %s27]]
      %s56 = ssub.s32 %s54, %s55
      %p57 = scmp.eq.s32.totalorder %s56, 0
      %s59 = sadd.s32 %s58, 1
      %s60 = scalar_select %p57, %s58, %s59
      %p63 = pneg %p57
      %p64 = scmp.eq.s32.totalorder %s20, 1
      %p65 = por %p63, %p64
      %p66 = scmp.ne.s32.totalorder %s58, %s61
      %p67 = scmp.eq.s32.totalorder %s20, 0
      %p68 = por %p66, %p67
      %p69 = scmp.ne.s32.totalorder %s58, %s61
      %p70 = scmp.eq.s32.totalorder %s25, 1
      %p71 = por %p69, %p70
      %p72 = scmp.ne.s32.totalorder %s61, %s62
      %p73 = scmp.eq.s32.totalorder %s25, 0
      %p74 = por %p72, %p73
      %p75 = scmp.ne.s32.totalorder %s61, %s62
      %p76 = scmp.eq.s32.totalorder %s26, 1
      %p77 = por %p75, %p76
      %p79 = scmp.ne.s32.totalorder %s62, %s78
      %p80 = scmp.eq.s32.totalorder %s26, 0
      %p81 = por %p79, %p80
      %s83 = sadd.s32 %s82, 1
      %p86 = scmp.eq.s32.totalorder %s20, 1
      %p87 = scmp.ne.s32.totalorder %s82, %s84
      %p88 = scmp.eq.s32.totalorder %s20, 0
      %p89 = por %p87, %p88
      %p90 = scmp.ne.s32.totalorder %s82, %s84
      %p91 = scmp.eq.s32.totalorder %s25, 1
      %p92 = por %p90, %p91
      %p93 = scmp.ne.s32.totalorder %s84, %s85
      %p94 = scmp.eq.s32.totalorder %s25, 0
      %p95 = por %p93, %p94
      %p96 = scmp.ne.s32.totalorder %s84, %s85
      %p97 = scmp.eq.s32.totalorder %s26, 1
      %p98 = por %p96, %p97
      %p100 = scmp.ne.s32.totalorder %s85, %s99
      %p101 = scmp.eq.s32.totalorder %s26, 0
      %p102 = por %p100, %p101
      %p103 = scmp.le.s32.totalorder 1, %s20
      %p104 = scmp.lt.s32.totalorder %s20, 3
      %p105 = pnand %p103, %p104
      %p106 = pneg %p105
      // Predicated region
      $region9: #{_lambda_.1} parent=5 // pred_check
        _
      $region10: #{_lambda_.1} parent=5 // pred_check_branch
        %108 = sbr.rel (%p105) target = $region12
      $region11: #{_lambda_.1} parent=5 // pred_region
        %s109 = ssub.s32 %s20, 1
      $region12: #{_lambda_.1} parent=5 // pred_fallthru
        _
      %p110 = scmp.lt.s32.totalorder %s20, 2
      // Predicated region
      $region13: #{_lambda_.1} parent=5 // pred_check
        %p111 = pneg %p110
      $region14: #{_lambda_.1} parent=5 // pred_check_branch
        %113 = sbr.rel (%p111) target = $region16
      $region15: #{_lambda_.1} parent=5 // pred_region
        // Predicated region
        $region17: #{_lambda_.1} parent=15 // pred_check
          %p114 = pneg %p40
        $region18: #{_lambda_.1} parent=15 // pred_check_branch
          %116 = sbr.rel (%p114) target = $region20
        $region19: #{_lambda_.1} parent=15 // pred_region
          %p117 = scmp.lt.s32.totalorder %s20, 1
          %s118 = scalar_select %p117, %s20, 1
          %s119 = smul.addr %s118, 8
          %s120 = scalar_lea.vmem %s1, %s119
        $region20: #{_lambda_.1} parent=15 // pred_fallthru
          _
        // Predicated region
        $region21: #{_lambda_.1} parent=15 // pred_check
          %p121 = pneg %p68
        $region22: #{_lambda_.1} parent=15 // pred_check_branch
          %123 = sbr.rel (%p121) target = $region24
        $region23: #{_lambda_.1} parent=15 // pred_region
          %s124 = sand.u32 %s58, 1
          %s125 = scalar_lea.sflag [#allocation5], %s124
          %s126 = sand.u32 %s58, 1
          %s127 = scalar_lea.vmem [#allocation4], %s126
          %s128 = sld [smem:[#allocation3 + %s20]]
          %130 = vsyncadd %s125, 0
          %s131 = scalar_lea.hbm %s2, %s128
          %s133 = sshll.u32 %s131, 4
          %s134 = int_to_ptr.hbm [resolvable:$true] %s133
          %s135 = sshll.u32 %s127, 4
          %s136 = int_to_ptr.vmem [resolvable:$true] %s135
          %138 = dma.hbm_to_vmem [thread:$0]  %s134, 16, %s136, %s125
        $region24: #{_lambda_.1} parent=15 // pred_fallthru
          _
      $region16: #{_lambda_.1} parent=5 // pred_fallthru
        _
      %p139 = scmp.le.s32.totalorder 1, %s20
      %p140 = scmp.lt.s32.totalorder %s20, 3
      %p141 = pnand %p139, %p140
      %p142 = pneg %p141
      // Predicated region
      $region25: #{_lambda_.1} parent=5 // pred_check
        _
      $region26: #{_lambda_.1} parent=5 // pred_check_branch
        %144 = sbr.rel (%p141) target = $region28
      $region27: #{_lambda_.1} parent=5 // pred_region
        %s145 = ssub.s32 %s20, 1
        %s146 = sand.u32 %s61, 1
        %s147 = scalar_lea.sflag [#allocation5], %s146
        %s148 = sand.u32 %s61, 1
        %s149 = scalar_lea.vmem [#allocation4], %s148
        // Predicated region
        $region29: #{_lambda_.1} parent=27 // pred_check
          %p150 = pneg %p74
        $region30: #{_lambda_.1} parent=27 // pred_check_branch
          %152 = sbr.rel (%p150) target = $region32
        $region31: #{_lambda_.1} parent=27 // pred_region
          %154 = dma.done %s147, 16
        $region32: #{_lambda_.1} parent=27 // pred_fallthru
          _
        %p155 = scmp.lt.s32.totalorder %s25, 1
        %s156 = scalar_select %p155, %s25, 1
        %s157 = smul.addr %s156, 8
        %s158 = scalar_lea.vmem %s1, %s157
        %p159 = pneg %p46
        %p160 = pneg %p43
        %s161 = sand.u32 %s61, 1
        %s162 = scalar_lea.sflag [#allocation5], %s161
        %s163 = sand.u32 %s61, 1
        %s164 = scalar_lea.vmem [#allocation4], %s163
        %p165 = pneg %p74
        %p166 = pneg %p71
        %p167 = pneg %p95
        %p168 = pneg %p92
        %p169 = scmp.lt.s32.totalorder %s25, 1
        %s170 = scalar_select %p169, %s25, 1
        %s171 = smul.addr %s170, 8
        %s172 = scalar_lea.vmem %s1, %s171
        %s173 = sld [smem:[#allocation3 + %s25]]
        %v174 = vld [vmem:[%s172] sm:$0xff]
        %v175 = vld [vmem:[%s149] sm:$0x1]
        %v176 = vmul.f32 %v174, %v174
        %178 = vrot.lane.b32.xlu0 %v176, 64
        %v179 = vpop.permute.xlu0 %178
        %v181 = vadd.f32 %v176, %v179
        %vm182 = vcmask 523264
        %v183 = vsel %vm182, %v181, 0.0
        %184 = vadd.xlane.f32.xlu0 %v183
        %v185 = vpop.xlane.xlu0 %184
        %v186 = vmul.f32 %v175, %v175
        %188 = vrot.lane.b32.xlu0 %v186, 64
        %v189 = vpop.permute.xlu0 %188
        %v191 = vadd.f32 %v186, %v189
        %vm192 = vcmask 516096
        %v193 = vsel %vm192, %v191, 0.0
        %194 = vadd.xlane.f32.xlu0 %v193
        %v195 = vpop.xlane.xlu0 %194
        %v196 = vrot.slane %v195, 4
        %v197 = vadd.f32 %v195, %v196
        %v198 = vrot.slane %v197, 2
        %v199 = vadd.f32 %v197, %v198
        %v200 = vrot.slane %v199, 1
        %v201 = vadd.f32 %v199, %v200
        %s202 = vtos %v201
        %v204 = vperm.slane %v175, 0
        %v206 = vmul.f32 %v204, %v174
        %208 = vrot.lane.b32.xlu0 %v206, 64
        %v209 = vpop.permute.xlu0 %208
        %v211 = vsub.f32 %v206, %v209
        %v212 = vsel %vm182, %v211, 0.0
        %213 = vadd.xlane.f32.xlu0 %v212
        %v214 = vpop.xlane.xlu0 %213
        %216 = vrot.lane.b32.xlu0 %v174, 64
        %v217 = vpop.permute.xlu0 %216
        %v219 = vmul.f32 %v204, %v217
        %221 = vrot.lane.b32.xlu0 %v219, 64
        %v222 = vpop.permute.xlu0 %221
        %v224 = vadd.f32 %v219, %v222
        %v225 = vsel %vm182, %v224, 0.0
        %226 = vadd.xlane.f32.xlu0 %v225
        %v227 = vpop.xlane.xlu0 %226
        %v228 = vmul.f32 %v214, %v214
        %v229 = vmul.f32 %v227, %v227
        %v230 = vadd.f32 %v228, %v229
        %v231 = vstv %s202
        %v232 = vrcp.pop %v231
        %v233 = vmul.f32 %v231, %v232
        %v234 = vsub.f32 1.0, %v233
        %v235 = vmul.f32 %v232, %v234
        %v236 = vadd.f32 %v232, %v235
        %vm237 = vweird.f32 %v231
        %vm238 = vweird.f32 %v232
        %vm239 = vmor %vm237, %vm238
        %v240 = vsel %vm239, %v232, %v236
        %v241 = vand.u32 2147483647, %v231
        %vm242 = vcmp.eq.f32.partialorder %v241, 8.507059e+37
        %v243 = vand.u32 %v231, 2147483648
        %v244 = vor.u32 1.1754944e-38, %v243
        %v245 = vsel %vm242, %v244, %v240
        %v246 = vmul.f32 %v230, %v245
        %v247 = vmul.f32 %v185, 0.0015625
        %v248 = vrcp.pop %v247
        %v249 = vmul.f32 %v246, %v248
        %v250 = vadd.f32 %v249, 1.0
        %v251 = vlog2.pop %v250
        %v252 = vmul.f32 %v251, 0.6931472
        %v253 = vrcp.pop 0.6931472
        %v254 = vmul.f32 0.6931472, %v253
        %v255 = vsub.f32 1.0, %v254
        %v256 = vmul.f32 %v253, %v255
        %v257 = vadd.f32 %v253, %v256
        %vm258 = vweird.f32 %v253
        %v259 = vsel %vm258, %v253, %v257
        %v260 = vmul.f32 %v252, %v259
        %v261 = vsub.f32 0.0, %v260
        %v262 = vmul.f32 %v185, %v248
        %v263 = vadd.f32 %v262, 1.0
        %v264 = vlog2.pop %v263
        %v265 = vmul.f32 %v264, 0.6931472
        %v266 = vmul.f32 %v265, %v259
        %v267 = vsub.f32 0.0, %v266
        %vm268 = vcmask 7168
        %v269 = vsel %vm268, %v261, 0.0
        %270 = vadd.xlane.f32.xlu0 %v269
        %v271 = vpop.xlane.xlu0 %270
        %v272 = vrot.slane %v271, 4
        %v273 = vadd.f32 %v271, %v272
        %v274 = vrot.slane %v273, 2
        %v275 = vadd.f32 %v273, %v274
        %v276 = vrot.slane %v275, 1
        %v277 = vadd.f32 %v275, %v276
        %s278 = vtos %v277
        %v279 = vsel %vm268, %v267, 0.0
        %280 = vadd.xlane.f32.xlu0 %v279
        %v281 = vpop.xlane.xlu0 %280
        %v282 = vrot.slane %v281, 4
        %v283 = vadd.f32 %v281, %v282
        %v284 = vrot.slane %v283, 2
        %v285 = vadd.f32 %v283, %v284
        %v286 = vrot.slane %v285, 1
        %v287 = vadd.f32 %v285, %v286
        %s288 = vtos %v287
        %v289 = vlaneseq
        %v290 = vand.u32 %v289, 127
        %vm291 = vcmp.eq.s32.totalorder %v290, 0
        %v292 = vstv %s278
        %v293 = vsel %vm291, %v292, 0.0
        %vm294 = vcmp.eq.s32.totalorder %v290, 1
        %v295 = vstv %s288
        %v296 = vsel %vm294, %v295, 0.0
        %v297 = vadd.f32 %v293, %v296
        %p298 = scmp.eq.s32.totalorder %s25, 0
        // Predicated region
        $region33: #{_lambda_.1} parent=27 // pred_check
          %p299 = pneg %p298
        $region34: #{_lambda_.1} parent=27 // pred_check_branch
          %301 = sbr.rel (%p299) target = $region36
        $region35: #{_lambda_.1} parent=27 // pred_region
          %302 = vst [vmem:[%s3] sm:$0x1] 0.0
        $region36: #{_lambda_.1} parent=27 // pred_fallthru
          _
        %v303 = vld [vmem:[%s3] sm:$0x1]
        %v304 = vadd.f32 %v303, %v297
        %305 = vst [vmem:[%s3] sm:$0x1] %v304
        %p306 = scmp.eq.s32.totalorder %s25, 1
        // Predicated region
        $region37: #{_lambda_.1} parent=27 // pred_check
          %p307 = pneg %p306
        $region38: #{_lambda_.1} parent=27 // pred_check_branch
          %309 = sbr.rel (%p307) target = $region40
        $region39: #{_lambda_.1} parent=27 // pred_region
          %v310 = vld [vmem:[%s3] sm:$0x1]
          %v311 = vmul.f32 %v310, 0.0625
          %312 = vst [vmem:[%s3] sm:$0x1] %v311
        $region40: #{_lambda_.1} parent=27 // pred_fallthru
          _
        // Predicated region
        $region41: #{_lambda_.1} parent=27 // pred_check
          %p313 = pneg %p92
        $region42: #{_lambda_.1} parent=27 // pred_check_branch
          %315 = sbr.rel (%p313) target = $region44
        $region43: #{_lambda_.1} parent=27 // pred_region
          _
        $region44: #{_lambda_.1} parent=27 // pred_fallthru
          _
        // Predicated region
        $region45: #{_lambda_.1} parent=27 // pred_check
          %p316 = pneg %p92
        $region46: #{_lambda_.1} parent=27 // pred_check_branch
          %318 = sbr.rel (%p316) target = $region48
        $region47: #{_lambda_.1} parent=27 // pred_region
          _
        $region48: #{_lambda_.1} parent=27 // pred_fallthru
          _
      $region28: #{_lambda_.1} parent=5 // pred_fallthru
        _
      %p319 = scmp.le.s32.totalorder 2, %s20
      // Predicated region
      $region49: #{_lambda_.1} parent=5 // pred_check
        %p320 = pneg %p319
      $region50: #{_lambda_.1} parent=5 // pred_check_branch
        %322 = sbr.rel (%p320) target = $region52
      $region51: #{_lambda_.1} parent=5 // pred_region
        %s323 = ssub.s32 %s20, 2
      $region52: #{_lambda_.1} parent=5 // pred_fallthru
        _
    $region6: #{_lambda_.1} parent=1 // loop_footer
      %s24 = sadd.s32 1, %s20
    $region7: #{_lambda_.1} parent=1 // loop_footer_branch
      %19 = sbr.rel target = $region3
    $region8: #{_lambda_.1} parent=1 // loop_exit
      _
    %324 = vsyncpa [#allocation5], 1
    %s325 = scalar_lea.sflag [#allocation5], 1
    %326 = vsyncpa %s325, 1

</llo_original>
